<compile_context>
chip_gen: v7x
topology: tpu7x:2x2x1
jax: 0.10.0
libtpu: 0.0.40
codegen_flags: <defaults>
</compile_context>

<pallas_src>
import jax
import jax.numpy as jnp
from jax.experimental import pallas as pl
from jax.experimental.pallas import tpu as pltpu

_AUX_W = 128  # lane-dense aux slab width: lane 0 = NLL, lane 1 = argmax (as f32)


def _make_decoder_kernel(label_size, with_labels):
    """Builds the fused linear + log_softmax + argmax (+ NLL) kernel body."""

    def kernel(x_ref, w_ref, b_ref, *rest):
        if with_labels:
            lab_ref, logp_ref, aux_ref = rest
        else:
            logp_ref, aux_ref = rest

        x = x_ref[...]                                    # (tn, H)
        w = w_ref[...]                                    # (H, L_pad), resident
        # hidden2label: logits = x @ W^T + b  (W pre-transposed & padded)
        logits = jnp.dot(x, w, preferred_element_type=jnp.float32) + b_ref[...]

        tn, l_pad = logits.shape
        col = jax.lax.broadcasted_iota(jnp.int32, (tn, l_pad), 1)
        valid = col < label_size                          # static label_size
        masked = jnp.where(valid, logits, jnp.float32(-1e30))

        # numerically stable log_softmax over the real label columns
        m = jnp.max(masked, axis=-1, keepdims=True)
        shifted = masked - m
        lse = jnp.log(jnp.sum(jnp.exp(shifted), axis=-1, keepdims=True))
        log_probs = shifted - lse
        logp_ref[...] = log_probs                         # lane-dense (tn, L_pad)

        # argmax with torch semantics (first maximal index); reuses m, so no
        # second cross-lane reduction for the max itself.
        is_max = masked == m
        pred = jnp.min(jnp.where(is_max, col, l_pad), axis=-1, keepdims=True)
        pred_f = pred.astype(jnp.float32)                 # (tn, 1)

        if with_labels:
            # per-example NLL: masked select instead of a materialized one-hot
            hit = col == lab_ref[...]
            nll = -jnp.sum(jnp.where(hit, log_probs, 0.0),
                           axis=-1, keepdims=True)        # (tn, 1)
        else:
            nll = jnp.zeros_like(pred_f)

        # pack NLL (lane 0) and prediction (lane 1) into one lane-dense slab
        aux_col = jax.lax.broadcasted_iota(jnp.int32, (tn, aux_ref.shape[-1]), 1)
        aux_ref[...] = jnp.where(aux_col == 0, nll,
                                 jnp.where(aux_col == 1, pred_f, 0.0))

    return kernel


def prepare_decoder_params(weight, bias, *, matmul_dtype=jnp.float32):
    """One-time parameter prep: transpose + lane-pad the weight, pad the bias.

    weight: (L, H) float32   (PyTorch nn.Linear layout)
    bias:   (L,)   float32 or None
    """
    l, h = weight.shape
    l_pad = pl.cdiv(l, 128) * 128
    w_t = jnp.pad(weight.T.astype(matmul_dtype), ((0, 0), (0, l_pad - l)))
    if bias is None:
        b = jnp.zeros((l,), jnp.float32)
    else:
        b = bias.astype(jnp.float32)
    b2d = jnp.pad(b.reshape(1, l), ((0, 0), (0, l_pad - l)))
    return {'w_t': w_t, 'b': b2d, 'hidden_size': h, 'label_size': l}


def vanilla_softmax_decoder(inputs, params, labels=None, *,
                            tile_n=512, reduction='mean'):
    """Forward pass of VanillaSoftmaxDecoder.

    inputs: (N, H) float32
    params: output of prepare_decoder_params
    labels: (N,) int32 or None
    Returns dict with 'log_probs', 'predict' and (if labels given) 'loss'.
    """
    n, h = inputs.shape
    assert h == params['hidden_size'], 'input size is not equal to hidden size'
    l = params['label_size']
    w_t, b2d = params['w_t'], params['b']
    l_pad = w_t.shape[1]

    # batch tiling: TILE_N rows per grid step (multiple of 8 sublanes)
    n8 = ((n + 7) // 8) * 8
    tn = min(tile_n, n8)
    n_pad = pl.cdiv(n, tn) * tn

    x = jnp.pad(inputs.astype(w_t.dtype), ((0, n_pad - n), (0, 0)))

    with_labels = labels is not None
    kernel = _make_decoder_kernel(l, with_labels)

    in_specs = [
        pl.BlockSpec((tn, h), lambda i: (i, 0)),        # x: row tile
        pl.BlockSpec((h, l_pad), lambda i: (0, 0)),     # W^T: VMEM-resident
        pl.BlockSpec((1, l_pad), lambda i: (0, 0)),     # bias: VMEM-resident
    ]
    args = [x, w_t, b2d]
    if with_labels:
        lab = jnp.pad(labels.astype(jnp.int32).reshape(n, 1),
                      ((0, n_pad - n), (0, 0)))
        in_specs.append(pl.BlockSpec((tn, 1), lambda i: (i, 0)))
        args.append(lab)

    logp_pad, aux = pl.pallas_call(
        kernel,
        out_shape=(
            jax.ShapeDtypeStruct((n_pad, l_pad), jnp.float32),  # log_probs (padded)
            jax.ShapeDtypeStruct((n_pad, _AUX_W), jnp.float32),  # [nll, pred, 0...]
        ),
        grid=(n_pad // tn,),
        in_specs=in_specs,
        out_specs=(
            pl.BlockSpec((tn, l_pad), lambda i: (i, 0)),
            pl.BlockSpec((tn, _AUX_W), lambda i: (i, 0)),
        ),
        compiler_params=pltpu.CompilerParams(
            dimension_semantics=("parallel",)),
    )(*args)

    results = {
        'log_probs': logp_pad[:n, :l],
        'predict': aux[:n, 1].astype(jnp.int32),
    }
    if with_labels:
        nll = aux[:n, 0]
        if reduction == 'mean':
            results['loss'] = jnp.mean(nll)
        elif reduction == 'sum':
            results['loss'] = jnp.sum(nll)
        else:  # 'none'
            results['loss'] = nll
    return results


if __name__ == "__main__":
    # Module config: hidden_size=32, label_size=16, bias=True, reduction='mean'
    hidden_size = 32
    label_size = 16

    key = jax.random.PRNGKey(0)
    k_x, k_w, k_lab = jax.random.split(key, 3)

    # Deterministic parameter init mirroring __init__:
    #   weight ~ N(0, 0.02), bias = 0
    weight = 0.02 * jax.random.normal(k_w, (label_size, hidden_size),
                                      dtype=jnp.float32)
    bias = jnp.zeros((label_size,), dtype=jnp.float32)
    params = prepare_decoder_params(weight, bias)   # transpose/pad done once

    def reference(x, lab):
        logits = x @ weight.T + bias
        logp = jax.nn.log_softmax(logits, axis=-1)
        preds = jnp.argmax(logp, axis=-1).astype(jnp.int32)
        loss = jnp.mean(-jnp.take_along_axis(logp, lab[:, None], axis=-1)[:, 0])
        return logp, preds, loss

    # Case 1: batch divisible by 8, with labels (training-style path).
    batch = 8
    inputs = jax.random.normal(k_x, (batch, hidden_size), dtype=jnp.float32)
    labels = jax.random.randint(k_lab, (batch,), 0, label_size, dtype=jnp.int32)

    out = vanilla_softmax_decoder(inputs, params, labels=labels)
    jax.block_until_ready(out)

    logp_ref, preds_ref, loss_ref = reference(inputs, labels)
    assert jnp.allclose(out['log_probs'], logp_ref, atol=1e-5)
    assert jnp.all(out['predict'] == preds_ref)
    assert jnp.allclose(out['loss'], loss_ref, atol=1e-5)

    # Case 2: ragged batch (exercises row padding) + inference path (no labels,
    # NLL branch skipped inside the kernel).
    batch2 = 5
    inputs2 = jax.random.normal(jax.random.PRNGKey(1),
                                (batch2, hidden_size), dtype=jnp.float32)
    out2 = vanilla_softmax_decoder(inputs2, params)
    jax.block_until_ready(out2)

    logits2 = inputs2 @ weight.T + bias
    logp2_ref = jax.nn.log_softmax(logits2, axis=-1)
    preds2_ref = jnp.argmax(logp2_ref, axis=-1).astype(jnp.int32)
    assert 'loss' not in out2
    assert jnp.allclose(out2['log_probs'], logp2_ref, atol=1e-5)
    assert jnp.all(out2['predict'] == preds2_ref)

    print("KERNEL_OK")
</pallas_src>

<mosaic_0001>
module attributes {stable_mosaic.version = 11 : i64} {
  func.func @kernel(%arg0: i32, %arg1: memref<8x32xf32, #tpu.memory_space<vmem>>, %arg2: memref<32x128xf32, #tpu.memory_space<vmem>>, %arg3: memref<1x128xf32, #tpu.memory_space<vmem>>, %arg4: memref<8x1xi32, #tpu.memory_space<vmem>>, %arg5: memref<8x128xf32, #tpu.memory_space<vmem>>, %arg6: memref<8x128xf32, #tpu.memory_space<vmem>>) attributes {dimension_semantics = [#tpu.dimension_semantics<parallel>], iteration_bounds = array<i64: 1>, scalar_prefetch = 0 : i64, scratch_operands = 0 : i64, tpu.core_type = #tpu.core_type<tc>, window_params = [{transform_indices = @transform_0, window_bounds = array<i64: 8, 32>}, {pipeline_mode = #tpu.pipeline_mode<synchronous>, transform_indices = @transform_1, window_bounds = array<i64: 32, 128>}, {pipeline_mode = #tpu.pipeline_mode<synchronous>, transform_indices = @transform_2, window_bounds = array<i64: 1, 128>}, {transform_indices = @transform_3, window_bounds = array<i64: 8, 1>}, {transform_indices = @transform_4, window_bounds = array<i64: 8, 128>}, {transform_indices = @transform_5, window_bounds = array<i64: 8, 128>}]} {
    %c0 = arith.constant 0 : index
    %c0_0 = arith.constant 0 : index
    %0 = vector.load %arg1[%c0, %c0_0] : memref<8x32xf32, #tpu.memory_space<vmem>>, vector<8x32xf32>
    %c0_1 = arith.constant 0 : index
    %c0_2 = arith.constant 0 : index
    %1 = vector.load %arg2[%c0_1, %c0_2] : memref<32x128xf32, #tpu.memory_space<vmem>>, vector<32x128xf32>
    %cst = arith.constant dense<0.000000e+00> : vector<8x128xf32>
    %2 = tpu.matmul %0, %1, %cst {dimension_numbers = #tpu.dot_dimension_numbers<[1], [0], [0], [1], [0, 0, 1, 1], [], []>} : vector<8x32xf32>, vector<32x128xf32>, vector<8x128xf32> -> vector<8x128xf32>
    %c0_3 = arith.constant 0 : index
    %c0_4 = arith.constant 0 : index
    %3 = vector.load %arg3[%c0_3, %c0_4] : memref<1x128xf32, #tpu.memory_space<vmem>>, vector<1x128xf32>
    %4 = vector.broadcast %3 : vector<1x128xf32> to vector<8x128xf32>
    %5 = arith.addf %2, %4 : vector<8x128xf32>
    %6 = tpu.iota {dimensions = array<i32: 1>} : vector<8x128xi32>
    %c16_i32 = arith.constant 16 : i32
    %7 = vector.broadcast %c16_i32 : i32 to vector<8x128xi32>
    %8 = arith.cmpi slt, %6, %7 : vector<8x128xi32>
    %cst_5 = arith.constant -1.000000e+30 : f32
    %9 = vector.broadcast %cst_5 : f32 to vector<8x128xf32>
    %10 = arith.select %8, %5, %9 : vector<8x128xi1>, vector<8x128xf32>
    %cst_6 = arith.constant dense<0xFF800000> : vector<8xf32>
    %11 = vector.multi_reduction <maximumf>, %10, %cst_6 [1] : vector<8x128xf32> to vector<8xf32>
    %12 = vector.shape_cast %11 : vector<8xf32> to vector<8x1xf32>
    %13 = vector.broadcast %12 : vector<8x1xf32> to vector<8x128xf32>
    %14 = arith.subf %10, %13 : vector<8x128xf32>
    %15 = math.exp %14 : vector<8x128xf32>
    %cst_7 = arith.constant dense<0.000000e+00> : vector<8xf32>
    %16 = vector.multi_reduction <add>, %15, %cst_7 [1] : vector<8x128xf32> to vector<8xf32>
    %17 = vector.shape_cast %16 : vector<8xf32> to vector<8x1xf32>
    %18 = math.log %17 : vector<8x1xf32>
    %19 = vector.broadcast %18 : vector<8x1xf32> to vector<8x128xf32>
    %20 = arith.subf %14, %19 : vector<8x128xf32>
    %c0_8 = arith.constant 0 : index
    %c0_9 = arith.constant 0 : index
    %21 = vector.load %arg5[%c0_8, %c0_9] : memref<8x128xf32, #tpu.memory_space<vmem>>, vector<8x128xf32>
    tpu.vector_store %arg5[%c0_8, %c0_9], %20 {strides = array<i32>} : memref<8x128xf32, #tpu.memory_space<vmem>>, vector<8x128xf32>,
    %22 = vector.broadcast %12 : vector<8x1xf32> to vector<8x128xf32>
    %23 = arith.cmpf oeq, %10, %22 : vector<8x128xf32>
    %c128_i32 = arith.constant 128 : i32
    %24 = vector.broadcast %c128_i32 : i32 to vector<8x128xi32>
    %25 = arith.select %23, %6, %24 : vector<8x128xi1>, vector<8x128xi32>
    %cst_10 = arith.constant dense<2147483647> : vector<8xi32>
    %26 = vector.multi_reduction <minsi>, %25, %cst_10 [1] : vector<8x128xi32> to vector<8xi32>
    %27 = vector.shape_cast %26 : vector<8xi32> to vector<8x1xi32>
    %28 = arith.sitofp %27 : vector<8x1xi32> to vector<8x1xf32>
    %c0_11 = arith.constant 0 : index
    %c0_12 = arith.constant 0 : index
    %29 = vector.load %arg4[%c0_11, %c0_12] : memref<8x1xi32, #tpu.memory_space<vmem>>, vector<8x1xi32>
    %30 = vector.broadcast %29 : vector<8x1xi32> to vector<8x128xi32>
    %31 = arith.cmpi eq, %6, %30 : vector<8x128xi32>
    %cst_13 = arith.constant 0.000000e+00 : f32
    %32 = vector.broadcast %cst_13 : f32 to vector<8x128xf32>
    %33 = arith.select %31, %20, %32 : vector<8x128xi1>, vector<8x128xf32>
    %cst_14 = arith.constant dense<0.000000e+00> : vector<8xf32>
    %34 = vector.multi_reduction <add>, %33, %cst_14 [1] : vector<8x128xf32> to vector<8xf32>
    %35 = vector.shape_cast %34 : vector<8xf32> to vector<8x1xf32>
    %cst_15 = arith.constant 0.000000e+00 : f32
    %36 = vector.broadcast %cst_15 : f32 to vector<8x1xf32>
    %37 = arith.subf %36, %35 : vector<8x1xf32>
    %38 = tpu.iota {dimensions = array<i32: 1>} : vector<8x128xi32>
    %c0_i32 = arith.constant 0 : i32
    %39 = vector.broadcast %c0_i32 : i32 to vector<8x128xi32>
    %40 = arith.cmpi eq, %38, %39 : vector<8x128xi32>
    %c1_i32 = arith.constant 1 : i32
    %41 = vector.broadcast %c1_i32 : i32 to vector<8x128xi32>
    %42 = arith.cmpi eq, %38, %41 : vector<8x128xi32>
    %cst_16 = arith.constant 0.000000e+00 : f32
    %43 = vector.shape_cast %28 : vector<8x1xf32> to vector<8x1xf32>
    %44 = vector.broadcast %43 : vector<8x1xf32> to vector<8x128xf32>
    %45 = vector.broadcast %cst_16 : f32 to vector<8x128xf32>
    %46 = arith.select %42, %44, %45 : vector<8x128xi1>, vector<8x128xf32>
    %47 = vector.shape_cast %37 : vector<8x1xf32> to vector<8x1xf32>
    %48 = vector.broadcast %47 : vector<8x1xf32> to vector<8x128xf32>
    %49 = arith.select %40, %48, %46 : vector<8x128xi1>, vector<8x128xf32>
    %c0_17 = arith.constant 0 : index
    %c0_18 = arith.constant 0 : index
    %50 = vector.load %arg6[%c0_17, %c0_18] : memref<8x128xf32, #tpu.memory_space<vmem>>, vector<8x128xf32>
    tpu.vector_store %arg6[%c0_17, %c0_18], %49 {strides = array<i32>} : memref<8x128xf32, #tpu.memory_space<vmem>>, vector<8x128xf32>,
    return
  }
  func.func @transform_0(%arg0: i32) -> (i32, i32) {
    %c0_i32 = arith.constant 0 : i32
    %c0_i32_0 = arith.constant 0 : i32
    return %arg0, %c0_i32 : i32, i32
  }
  func.func @transform_1(%arg0: i32) -> (i32, i32) {
    %c0_i32 = arith.constant 0 : i32
    %c0_i32_0 = arith.constant 0 : i32
    %c0_i32_1 = arith.constant 0 : i32
    return %c0_i32, %c0_i32_0 : i32, i32
  }
  func.func @transform_2(%arg0: i32) -> (i32, i32) {
    %c0_i32 = arith.constant 0 : i32
    %c0_i32_0 = arith.constant 0 : i32
    %c0_i32_1 = arith.constant 0 : i32
    return %c0_i32, %c0_i32_0 : i32, i32
  }
  func.func @transform_3(%arg0: i32) -> (i32, i32) {
    %c0_i32 = arith.constant 0 : i32
    %c0_i32_0 = arith.constant 0 : i32
    return %arg0, %c0_i32 : i32, i32
  }
  func.func @transform_4(%arg0: i32) -> (i32, i32) {
    %c0_i32 = arith.constant 0 : i32
    %c0_i32_0 = arith.constant 0 : i32
    return %arg0, %c0_i32 : i32, i32
  }
  func.func @transform_5(%arg0: i32) -> (i32, i32) {
    %c0_i32 = arith.constant 0 : i32
    %c0_i32_0 = arith.constant 0 : i32
    return %arg0, %c0_i32 : i32, i32
  }
}

</mosaic_0001>

<llo_original>
// kernel: tpu_custom_call.1
$region0: #{tpu_custom_call.1}
  #allocation0 [shape = 'u32[]', space=smem, size = 0x4, offset = 0x4, fixed_abs, tag = 'smem constant byte address 0x4 - core index']
  #allocation1 [shape = 'u32[144,128]{1,0:T(1,128)}', space=vmem, size = 0x12000, scoped, tag = 'internal scratch']
  %s0 = inlined_call_operand.vmem [shape: f32[8,32], index: 0, kind: input, shape index: {}]
  %s1 = inlined_call_operand.hbm [shape: f32[32,128], index: 1, kind: input, shape index: {}]
  %s2 = inlined_call_operand.vmem [shape: f32[1,128], index: 2, kind: input, shape index: {}]
  %s3 = inlined_call_operand.vmem [shape: s32[8,1], index: 3, kind: input, shape index: {}]
  %s4 = inlined_call_operand.hbm [shape: f32[8,128], index: 4, kind: output, shape index: {0}]
  %s5 = inlined_call_operand.hbm [shape: f32[8,128], index: 5, kind: output, shape index: {1}]
  %6 = xla_tuple %s4, %s5
  %s7 = sld [smem:[#allocation0]]
  $region38: #{tpu_custom_call.1} parent=0
    _
  %s9 = ssub.s32 1, %s7
  %s10 = scalar_select 0, %s9, %s7
  $region1: #{tpu_custom_call.1} parent=0
    #allocation2 [shape = 'u8[16384]{0}', space=vmem, size = 0x4000, scoped, tag = 'input window, operand 1, single buffered']
    #allocation3 [shape = 's32[1]{0}', space=sflag, size = 0x4, scoped, tag = 'scoped memory for tpu_custom_call.1']
    #allocation4 [shape = 's32[1]{0}', space=sflag, size = 0x4, scoped, tag = 'scoped memory for tpu_custom_call.1']
    #allocation5 [shape = 'u8[4096]{0}', space=vmem, size = 0x1000, scoped, tag = 'output window, operand 0, single buffered']
    #allocation6 [shape = 'u8[4096]{0}', space=vmem, size = 0x1000, scoped, tag = 'output window, operand 1, single buffered']
    #allocation7 [shape = 's32[1]{0}', space=sflag, size = 0x4, scoped, tag = 'scoped memory for tpu_custom_call.1']
    %11 = vsyncpa [#allocation3], 0
    %12 = vsyncpa [#allocation4], 0
    %13 = vsyncpa [#allocation7], 0
    // Predicated region
    $region2: #{tpu_custom_call.1} parent=1 // pred_check
      _
    $region3: #{tpu_custom_call.1} parent=1 // pred_check_branch
      %15 = sbr.rel (0) target = $region5
    $region4: #{tpu_custom_call.1} parent=1 // pred_region
      _
    $region5: #{tpu_custom_call.1} parent=1 // pred_fallthru
      _
    // Predicated region
    $region6: #{tpu_custom_call.1} parent=1 // pred_check
      _
    $region7: #{tpu_custom_call.1} parent=1 // pred_check_branch
      %17 = sbr.rel (0) target = $region9
    $region8: #{tpu_custom_call.1} parent=1 // pred_region
      %s19 = ssub.s32 512, 512
      %20 = vsyncadd [#allocation3], %s19
      %s21 = sshll.u32 [#allocation2], 4
      %s22 = int_to_ptr.vmem [resolvable:$true] %s21
      %27 = dma.hbm_to_vmem [thread:$0]  %s1, 512, %s22, [#allocation3], 128, 128, 8
    $region9: #{tpu_custom_call.1} parent=1 // pred_fallthru
      _
    // Predicated region
    $region10: #{tpu_custom_call.1} parent=1 // pred_check
      _
    $region11: #{tpu_custom_call.1} parent=1 // pred_check_branch
      %29 = sbr.rel (0) target = $region13
    $region12: #{tpu_custom_call.1} parent=1 // pred_region
      _
    $region13: #{tpu_custom_call.1} parent=1 // pred_fallthru
      _
    // Predicated region
    $region14: #{tpu_custom_call.1} parent=1 // pred_check
      _
    $region15: #{tpu_custom_call.1} parent=1 // pred_check_branch
      %31 = sbr.rel (0) target = $region17
    $region16: #{tpu_custom_call.1} parent=1 // pred_region
      _
    $region17: #{tpu_custom_call.1} parent=1 // pred_fallthru
      _
    // Predicated region
    $region18: #{tpu_custom_call.1} parent=1 // pred_check
      _
    $region19: #{tpu_custom_call.1} parent=1 // pred_check_branch
      %33 = sbr.rel (0) target = $region21
    $region20: #{tpu_custom_call.1} parent=1 // pred_region
      %34 = dma.done [#allocation3], 512
    $region21: #{tpu_custom_call.1} parent=1 // pred_fallthru
      _
    %v35 = vld [vmem:[%s0] sm:$0xff]
    %v36 = vld [vmem:[#allocation2] sm:$0xff]
    %v37 = vld [vmem:[#allocation2 + $0x8] sm:$0xff]
    %v38 = vld [vmem:[#allocation2 + $0x10] sm:$0xff]
    %v39 = vld [vmem:[#allocation2 + $0x18] sm:$0xff]
    %v40 = vld [vmem:[%s2] sm:$0x1]
    %v42 = vlaneseq
    %v43 = vshrl.u32 %v42, 7
    %v44 = vsub.s32 0, %v43
    %v45 = vrot.slane %v40, %v44
    %vm47 = vcmask 261120
    %v49 = vsel %vm47, %v35, 0
    %51 = vmatprep.subr.mxu0 0.0
    %52 = vmatpush1.msra.mxu0 %v36
    %53 = vmatprep.subr.mxu0 0.0
    %54 = vmatpush1.msra.mxu0 %v37
    %55 = vmatprep.subr.mxu0 0.0
    %56 = vmatpush1.msra.mxu0 %v38
    %57 = vmatprep.subr.mxu0 0.0
    %58 = vmatpush1.msra.mxu0 %v39
    %59 = vmatprep.subr.mxu0 0.0
    %60 = vmatpush1.msra.mxu0 0.0
    %61 = vmatprep.subr.mxu0 0.0
    %62 = vmatpush1.msra.mxu0 0.0
    %63 = vmatprep.subr.mxu0 0.0
    %64 = vmatpush1.msra.mxu0 0.0
    %65 = vmatprep.subr.mxu0 0.0
    %66 = vmatpush1.msra.mxu0 0.0
    %67 = vmatprep.subr.mxu0 0.0
    %68 = vmatpush1.msra.mxu0 0.0
    %69 = vmatprep.subr.mxu0 0.0
    %70 = vmatpush1.msra.mxu0 0.0
    %71 = vmatprep.subr.mxu0 0.0
    %72 = vmatpush1.msra.mxu0 0.0
    %73 = vmatprep.subr.mxu0 0.0
    %74 = vmatpush1.msra.mxu0 0.0
    %75 = vmatprep.subr.mxu0 0.0
    %76 = vmatpush1.msra.mxu0 0.0
    %77 = vmatprep.subr.mxu0 0.0
    %78 = vmatpush1.msra.mxu0 0.0
    %79 = vmatprep.subr.mxu0 0.0
    %80 = vmatpush1.msra.mxu0 0.0
    %81 = vmatprep.subr.mxu0 0.0
    %82 = vmatpush1.msra.mxu0 0.0
    %83 = vmatprep.subr.mxu0 0.0
    %84 = vmatpush1.msra.mxu0 0.0
    %85 = vmatprep.subr.mxu0 0.0
    %86 = vmatpush1.msra.mxu0 0.0
    %87 = vmatprep.subr.mxu0 0.0
    %88 = vmatpush1.msra.mxu0 0.0
    %89 = vmatprep.subr.mxu0 0.0
    %90 = vmatpush1.msra.mxu0 0.0
    %91 = vmatprep.subr.mxu0 0.0
    %92 = vmatpush1.msra.mxu0 0.0
    %93 = vmatprep.subr.mxu0 0.0
    %94 = vmatpush1.msra.mxu0 0.0
    %95 = vmatprep.subr.mxu0 0.0
    %96 = vmatpush1.msra.mxu0 0.0
    %97 = vmatprep.subr.mxu0 0.0
    %98 = vmatpush1.msra.mxu0 0.0
    %99 = vmatprep.subr.mxu0 0.0
    %100 = vmatpush1.msra.mxu0 0.0
    %101 = vmatprep.subr.mxu0 0.0
    %102 = vmatpush1.msra.mxu0 0.0
    %103 = vmatprep.subr.mxu0 0.0
    %104 = vmatpush1.msra.mxu0 0.0
    %105 = vmatprep.subr.mxu0 0.0
    %106 = vmatpush1.msra.mxu0 0.0
    %107 = vmatprep.subr.mxu0 0.0
    %108 = vmatpush1.msra.mxu0 0.0
    %109 = vmatprep.subr.mxu0 0.0
    %110 = vmatpush1.msra.mxu0 0.0
    %111 = vmatprep.subr.mxu0 0.0
    %112 = vmatpush1.msra.mxu0 0.0
    %113 = vmatprep.subr.mxu0 0.0
    %114 = vmatpush1.msra.mxu0 0.0
    %115 = vmatprep.mubr.f32.mxu0 0.0
    %116 = vmatmul.mubr.f32.gmra.mrb[0].mxu0 %v49
    %v117 = vpop.f32.mrb[0].mxu0
    %v118 = vadd.f32 %v45, %v117
    %v119 = vpop.f32.mrb[0].mxu0
    %120 = vdwg.mxu0
    %v121 = vlaneseq
    %v122 = vand.u32 %v121, 127
    %vm123 = vcmp.lt.s32.totalorder %v122, 16
    %v124 = vsel %vm123, %v118, -1e+30
    %125 = vmax.xlane.f32.xlu0 %v124
    %v126 = vpop.xlane.xlu0 %125
    %v127 = vsub.f32 %v124, %v126
    %v128 = vmul.f32 %v127, 1.442695
    %v129 = vpow.pop %v128
    %130 = vadd.xlane.f32.xlu0 %v129
    %v131 = vpop.xlane.xlu0 %130
    %v132 = vlog2.pop %v131
    %v133 = vmul.f32 %v132, 0.6931472
    %v134 = vsub.f32 %v127, %v133
    %135 = vst [vmem:[#allocation5] sm:$0xff] %v134
    %vm136 = vcmp.eq.f32.partialorder %v124, %v126
    %v137 = vsel %vm136, %v122, 128
    %v138 = vand.u32 %v137, 65535
    %v139 = vshra.s32 %v137, 16
    %v140 = vcvt.s32.f32 %v138
    %v141 = vcvt.s32.f32 %v139
    %142 = vmin.xlane.f32.xlu0 %v141
    %v143 = vpop.xlane.xlu0 %142
    %vm144 = vcmp.eq.f32.partialorder %v141, %v143
    %v145 = vsel %vm144, %v140, inf
    %146 = vmin.xlane.f32.xlu0 %v145
    %v147 = vpop.xlane.xlu0 %146
    %v148 = vcvt.f32.s32 %v147
    %v149 = vcvt.f32.s32 %v143
    %v150 = vshll.u32 %v149, 16
    %v151 = vadd.s32 %v150, %v148
    %v152 = vcvt.s32.f32 %v151
    %v153 = vld [vmem:[%s3] sm:$0xff]
    %154 = vset.pattern.permute.xlu0 0
    %155 = vperm.xlu0 %154, %v153
    %v156 = vpop.permute.xlu0 %155
    %vm157 = vcmp.eq.s32.totalorder %v122, %v156
    %v158 = vsel %vm157, %v134, 0.0
    %159 = vadd.xlane.f32.xlu0 %v158
    %v160 = vpop.xlane.xlu0 %159
    %v161 = vsub.f32 0.0, %v160
    %vm162 = vcmp.eq.s32.totalorder %v122, 0
    %vm163 = vcmp.eq.s32.totalorder %v122, 1
    %v164 = vsel %vm163, %v152, 0.0
    %v165 = vsel %vm162, %v161, %v164
    %166 = vst [vmem:[#allocation6] sm:$0xff] %v165
    // Predicated region
    $region22: #{tpu_custom_call.1} parent=1 // pred_check
      _
    $region23: #{tpu_custom_call.1} parent=1 // pred_check_branch
      %168 = sbr.rel (0) target = $region25
    $region24: #{tpu_custom_call.1} parent=1 // pred_region
      %s170 = ssub.s32 128, 128
      %171 = vsyncadd [#allocation4], %s170
      %s173 = sshll.u32 [#allocation5], 4
      %s174 = int_to_ptr.vmem [resolvable:$true] %s173
      %176 = dma.vmem_to_hbm [thread:$0]  %s174, 128, %s4, [#allocation4]
    $region25: #{tpu_custom_call.1} parent=1 // pred_fallthru
      _
    // Predicated region
    $region26: #{tpu_custom_call.1} parent=1 // pred_check
      _
    $region27: #{tpu_custom_call.1} parent=1 // pred_check_branch
      %178 = sbr.rel (0) target = $region29
    $region28: #{tpu_custom_call.1} parent=1 // pred_region
      %s180 = ssub.s32 128, 128
      %181 = vsyncadd [#allocation7], %s180
      %s183 = sshll.u32 [#allocation6], 4
      %s184 = int_to_ptr.vmem [resolvable:$true] %s183
      %186 = dma.vmem_to_hbm [thread:$0]  %s184, 128, %s5, [#allocation7]
    $region29: #{tpu_custom_call.1} parent=1 // pred_fallthru
      _
    // Predicated region
    $region30: #{tpu_custom_call.1} parent=1 // pred_check
      _
    $region31: #{tpu_custom_call.1} parent=1 // pred_check_branch
      %188 = sbr.rel (0) target = $region33
    $region32: #{tpu_custom_call.1} parent=1 // pred_region
      %189 = dma.done [#allocation4], 128
    $region33: #{tpu_custom_call.1} parent=1 // pred_fallthru
      _
    // Predicated region
    $region34: #{tpu_custom_call.1} parent=1 // pred_check
      _
    $region35: #{tpu_custom_call.1} parent=1 // pred_check_branch
      %191 = sbr.rel (0) target = $region37
    $region36: #{tpu_custom_call.1} parent=1 // pred_region
      %192 = dma.done [#allocation7], 128
    $region37: #{tpu_custom_call.1} parent=1 // pred_fallthru
      _
    %193 = vsyncpa [#allocation3], 1
    %194 = vsyncpa [#allocation4], 1
    %195 = vsyncpa [#allocation7], 1

</llo_original>
